<compile_context>
chip_gen: v7x
topology: tpu7x:2x2x1
jax: 0.10.0
libtpu: 0.0.40
codegen_flags: <defaults>
</compile_context>

<pallas_src>
import functools

import jax
import jax.numpy as jnp
from jax import lax
from jax.experimental import pallas as pl
from jax.experimental.pallas import tpu as pltpu

NEG_SLOPE = 0.2        # GATConv default LeakyReLU slope (python float literal)
MASK_BIG = 1e30        # additive mask magnitude (python float literal, f32-safe)
GAT_HIDDEN = 16        # conv1..conv3 out_channels


# ----------------------------------------------------------------------------
# Parameter-slab layout (shared by the host-side packer and the kernel).
# ----------------------------------------------------------------------------
def _slab_layout(fin):
  h = GAT_HIDDEN
  wext = h + 1                      # per-layer extended width: [W | W@att_dst^T]
  pext = 1 + 1                      # conv_p2 extended width
  nxw = 3 * wext + pext             # 53: conv1 | conv2_x | conv3_x | conv_p2_x
  row_wa = ((max(fin, 4) + 7) // 8) * 8     # xa-side 16-row weight band
  row_ws = row_wa + h                        # att_src rows for conv2/3/p2 (3 rows)
  row_b = row_ws + 3                         # single bias row
  rows = ((row_b + 1 + 7) // 8) * 8
  return dict(
      wext=wext, pext=pext, nxw=nxw,
      col_wsx=64,                            # x-side att_src rows, band X
      row_wa=row_wa, col_w2a=0, col_w3a=wext, col_wpa=2 * wext,
      col_wv1=40, col_wv2=56,
      row_ws=row_ws,
      row_b=row_b, col_b1=0, col_b2=h, col_b3=2 * h, col_bp=3 * h,
      col_bv1=64, col_bv2=80,
      rows=rows, cols=128)


# ----------------------------------------------------------------------------
# Fused kernel: conv1 -> conv2 -> conv3 -> conv_p2 -> mean-pool/fc value head
# ----------------------------------------------------------------------------
def _gcn31_fused_kernel(adj_ref, x_ref, pool_ref, slab_ref, px_ref, vx_ref):
  n, fin = x_ref.shape
  h_dim = GAT_HIDDEN
  L = _slab_layout(fin)
  wext = L["wext"]
  row_wa, row_ws, row_b = L["row_wa"], L["row_ws"], L["row_b"]

  x = x_ref[...]                                   # [N, Fin] f32
  xb = x.astype(jnp.bfloat16)

  # Edge mask as an additive f32 bias (0 on edges incl. self-loops, -1e30 off-
  # edge); computed once from the int8 adjacency and reused by all 4 layers.
  adj_f = adj_ref[...].astype(jnp.int32).astype(jnp.float32)
  mask_bias = (adj_f - 1.0) * MASK_BIG             # [N, N] f32

  def bias_row(col, width):                        # f32 bias slice [1, width]
    return slab_ref[row_b:row_b + 1, col:col + width]

  def w_bf16(r0, rlen, c0, clen):                  # bf16 weight slice for MXU
    return slab_ref[r0:r0 + rlen, c0:c0 + clen].astype(jnp.bfloat16)

  # ---- hoisted, layer-independent matmuls (off the layer dependency chain) --
  # (1) x @ [W1|d1 | W2x|d2 | W3x|d3 | Wpx|dp]  -> [N, 53]
  xw = jnp.dot(xb, w_bf16(0, fin, 0, L["nxw"]),
               preferred_element_type=jnp.float32)
  # (2) all four layers' x-side att_src scores, lane-packed rows -> [4, N]
  sx = lax.dot_general(w_bf16(0, 4, L["col_wsx"], fin), xb,
                       (((1,), (1,)), ((), ())),
                       preferred_element_type=jnp.float32)

  def gat(h_ext, s_row, fout, brow):
    """Masked GAT attention; h_ext = [X_cat@W | X_cat@(W@att_dst^T)]."""
    h = h_ext[:, :fout]
    d_col = h_ext[:, fout:fout + 1]                # dst scores, [N, 1]
    e = d_col + s_row                              # e[i, j] = d_i + s_j
    e = jnp.where(e > 0, e, NEG_SLOPE * e) + mask_bias   # LeakyReLU + edge mask
    m = jnp.max(e, axis=-1, keepdims=True)
    p = jnp.exp(e - m)                             # masked lanes underflow to 0
    inv = pl.reciprocal(jnp.sum(p, axis=-1, keepdims=True), approx=True)
    out = jnp.dot((p * inv).astype(jnp.bfloat16), h.astype(jnp.bfloat16),
                  preferred_element_type=jnp.float32) + brow
    return jnp.maximum(out, 0.0)                   # every layer is relu'd

  # conv1: both h_ext and the src scores come from the hoisted matmuls.
  xa = gat(xw[:, 0:wext], sx[0:1, :], h_dim, bias_row(L["col_b1"], h_dim))

  def gat_cat(xa_in, k, col_wa, col_xw, fout, brow):
    """Layer on concat([xa, x]): xa-side matmuls + hoisted x-side slices."""
    xab = xa_in.astype(jnp.bfloat16)
    width = fout + 1
    h_ext = (jnp.dot(xab, w_bf16(row_wa, h_dim, col_wa, width),
                     preferred_element_type=jnp.float32)
             + xw[:, col_xw:col_xw + width])
    # src scores: xa-contribution (independent of h_ext -> issued in parallel)
    # plus the hoisted x-contribution.
    s_row = (lax.dot_general(w_bf16(row_ws + k, 1, 0, h_dim), xab,
                             (((1,), (1,)), ((), ())),
                             preferred_element_type=jnp.float32)
             + sx[k + 1:k + 2, :])
    return gat(h_ext, s_row, fout, brow)

  xa = gat_cat(xa, 0, L["col_w2a"], wext, h_dim, bias_row(L["col_b2"], h_dim))
  xa3 = gat_cat(xa, 1, L["col_w3a"], 2 * wext, h_dim,
                bias_row(L["col_b3"], h_dim))
  # conv_p2 feeds only px; the value head pools conv3's activations (xa3),
  # matching the PyTorch reference.
  px_ref[...] = gat_cat(xa3, 2, L["col_wpa"], 3 * wext, 1,
                        bias_row(L["col_bp"], 1))

  # Value head: per-graph mean pool as one matmul, then fc_v1 -> relu -> fc_v2.
  v = jnp.dot(pool_ref[...].astype(jnp.bfloat16), xa3.astype(jnp.bfloat16),
              preferred_element_type=jnp.float32)                     # [G, 16]
  hv = jnp.maximum(
      jnp.dot(v.astype(jnp.bfloat16), w_bf16(row_wa, h_dim, L["col_wv1"], h_dim),
              preferred_element_type=jnp.float32)
      + bias_row(L["col_bv1"], h_dim), 0.0)
  vx_ref[...] = (jnp.dot(hv.astype(jnp.bfloat16),
                         w_bf16(row_wa, h_dim, L["col_wv2"], 1),
                         preferred_element_type=jnp.float32)
                 + bias_row(L["col_bv2"], 1))                         # [G, 1]


# ----------------------------------------------------------------------------
# Host-side parameter packing: every weight / bias into one f32 slab.
# ----------------------------------------------------------------------------
def pack_params(params):
  w1, a1s, a1d, b1 = params["conv1"]
  w2, a2s, a2d, b2 = params["conv2"]
  w3, a3s, a3d, b3 = params["conv3"]
  wp, aps, apd, bp = params["conv_p2"]
  wv1, bv1, wv2, bv2 = params["fc"]
  h = GAT_HIDDEN
  fin = w1.shape[0]
  assert fin <= 64, "slab packing assumes num_node_features <= 64"
  L = _slab_layout(fin)

  def ext(w, att_dst):          # fold att_dst into the weight: [in, out] -> [in, out+1]
    return jnp.concatenate([w, w @ att_dst.T], axis=1)

  # Split conv2/3/p2 weights so concat([xa, x]) @ W == xa @ W_a + x @ W_x.
  w2a, w2x = w2[:h], w2[h:]
  w3a, w3x = w3[:h], w3[h:]
  wpa, wpx = wp[:h], wp[h:]

  # x-side fused weight (one hoisted matmul covers conv1 and the x halves).
  wx_all = jnp.concatenate(
      [ext(w1, a1d), ext(w2x, a2d), ext(w3x, a3d), ext(wpx, apd)], axis=1)
  # att_src folded into weight ROWS: x-side for all 4 layers, xa-side for 2..p2.
  wsx = jnp.concatenate([(w1 @ a1s.T).T, (w2x @ a2s.T).T,
                         (w3x @ a3s.T).T, (wpx @ aps.T).T], axis=0)   # [4, fin]
  wsa = jnp.concatenate([(w2a @ a2s.T).T, (w3a @ a3s.T).T,
                         (wpa @ aps.T).T], axis=0)                    # [3, 16]

  slab = jnp.zeros((L["rows"], L["cols"]), jnp.float32)
  slab = slab.at[0:fin, 0:L["nxw"]].set(wx_all)
  slab = slab.at[0:4, L["col_wsx"]:L["col_wsx"] + fin].set(wsx)
  r = L["row_wa"]
  slab = slab.at[r:r + h, L["col_w2a"]:L["col_w2a"] + h + 1].set(ext(w2a, a2d))
  slab = slab.at[r:r + h, L["col_w3a"]:L["col_w3a"] + h + 1].set(ext(w3a, a3d))
  slab = slab.at[r:r + h, L["col_wpa"]:L["col_wpa"] + 2].set(ext(wpa, apd))
  slab = slab.at[r:r + h, L["col_wv1"]:L["col_wv1"] + h].set(wv1)
  slab = slab.at[r:r + h, L["col_wv2"]:L["col_wv2"] + 1].set(wv2)
  slab = slab.at[L["row_ws"]:L["row_ws"] + 3, 0:h].set(wsa)
  rb = L["row_b"]
  slab = slab.at[rb, L["col_b1"]:L["col_b1"] + h].set(b1[0])
  slab = slab.at[rb, L["col_b2"]:L["col_b2"] + h].set(b2[0])
  slab = slab.at[rb, L["col_b3"]:L["col_b3"] + h].set(b3[0])
  slab = slab.at[rb, L["col_bp"]:L["col_bp"] + 1].set(bp[0])
  slab = slab.at[rb, L["col_bv1"]:L["col_bv1"] + h].set(bv1[0])
  slab = slab.at[rb, L["col_bv2"]:L["col_bv2"] + 1].set(bv2[0])
  return slab


# ----------------------------------------------------------------------------
# Wrappers
# ----------------------------------------------------------------------------
_VMEM = pl.BlockSpec(memory_space=pltpu.MemorySpace.VMEM)


def _gcn31_fused(slab, x, adj, pool):
  n = x.shape[0]
  g = pool.shape[0]
  return pl.pallas_call(
      _gcn31_fused_kernel,
      out_shape=(jax.ShapeDtypeStruct((n, 1), jnp.float32),   # px column
                 jax.ShapeDtypeStruct((g, 1), jnp.float32)),  # vx
      in_specs=[_VMEM, _VMEM, _VMEM, _VMEM],
      out_specs=(_VMEM, _VMEM),
  )(adj, x, pool, slab)


def _build_adj(edge_index, num_nodes):
  """Dense int8 adjacency mask: adj[dst, src] = 1, plus self-loops."""
  adj = jnp.zeros((num_nodes, num_nodes), jnp.int8)
  adj = adj.at[edge_index[1], edge_index[0]].set(1)
  return jnp.maximum(adj, jnp.eye(num_nodes, dtype=jnp.int8))


def _build_pool(num_nodes, group):
  """[G, N] matrix: pool @ xa == per-graph mean over `group` contiguous nodes."""
  g = num_nodes // group
  return jnp.repeat(jnp.eye(g, dtype=jnp.float32), group, axis=1) / group


@functools.partial(jax.jit, static_argnames=("out_size",))
def gcn31_forward(slab, x, edge_index, edge_attr, out_size):
  """Mirrors GCN31.forward(data) with rem_index=False."""
  # TODO(synk): reference passes edge_attr[:, :2] to GATConv, but GATConv was
  # built with edge_dim=None, so edge features never enter the computation;
  # they are ignored here as well.
  del edge_attr
  n = x.shape[0]
  m = min(out_size, n)
  assert n % m == 0, "px.view(-1, min(out_size, N)) requires N % group == 0"
  adj = _build_adj(edge_index, n)        # static topology -> tiny fused prologue
  pool = _build_pool(n, m)
  px_col, vx = _gcn31_fused(slab, x, adj, pool)
  return px_col.reshape(-1, m), vx       # px.view(-1, min(out_size, N))


# ----------------------------------------------------------------------------
# Deterministic parameter init (synthetic; shapes follow the module's __init__)
# ----------------------------------------------------------------------------
def _glorot(key, shape):
  fan_in, fan_out = shape
  std = (2.0 / (fan_in + fan_out)) ** 0.5
  return (std * jax.random.normal(key, shape)).astype(jnp.float32)


def _gat_params(key, fin, fout):
  k1, k2, k3 = jax.random.split(key, 3)
  w = _glorot(k1, (fin, fout))                 # lin weight, stored [in, out]
  att_src = _glorot(k2, (1, fout))
  att_dst = _glorot(k3, (1, fout))
  bias = jnp.zeros((1, fout), jnp.float32)
  return (w, att_src, att_dst, bias)


def init_params(key, num_node_features):
  k1, k2, k3, k4, k5, k6 = jax.random.split(key, 6)
  h = GAT_HIDDEN
  return {
      "conv1": _gat_params(k1, num_node_features, h),
      "conv2": _gat_params(k2, h + num_node_features, h),
      "conv3": _gat_params(k3, h + num_node_features, h),
      "conv_p2": _gat_params(k4, h + num_node_features, 1),
      "fc": (
          _glorot(k5, (h, h)),                       # fc_v1 weight [in, out]
          jnp.zeros((1, h), jnp.float32),            # fc_v1 bias = 0
          _glorot(k6, (h, 1)),                       # fc_v2 weight [in, out]
          jnp.zeros((1, 1), jnp.float32),            # fc_v2 bias = 0
      ),
  }


def make_edges(num_graphs, nodes_per_graph):
  srcs, dsts = [], []
  for g in range(num_graphs):
    off = g * nodes_per_graph
    for i in range(nodes_per_graph):
      j = (i + 1) % nodes_per_graph
      k = (i + 3) % nodes_per_graph
      srcs += [off + i, off + j, off + i]
      dsts += [off + j, off + i, off + k]
  return jnp.array([srcs, dsts], dtype=jnp.int32)


# ----------------------------------------------------------------------------
if __name__ == "__main__":
  key = jax.random.PRNGKey(0)
  out_size = 8
  num_node_features = 4
  num_graphs = 2
  n_nodes = num_graphs * out_size

  kx, ke, kp = jax.random.split(key, 3)
  x = jax.random.normal(kx, (n_nodes, num_node_features), dtype=jnp.float32)
  edge_index = make_edges(num_graphs, out_size)                      # [2, 48]
  edge_attr = jax.random.normal(ke, (edge_index.shape[1], 3), dtype=jnp.float32)

  params = init_params(kp, num_node_features)
  slab = pack_params(params)           # pre-packed host-side: one DMA slab

  px, vx = gcn31_forward(slab, x, edge_index, edge_attr, out_size=out_size)
  jax.block_until_ready((px, vx))

  assert px.shape == (num_graphs, out_size), px.shape
  assert vx.shape == (num_graphs, 1), vx.shape
  assert jnp.all(jnp.isfinite(px)) and jnp.all(jnp.isfinite(vx))
  print("KERNEL_OK")
</pallas_src>

<mosaic_0001>
module attributes {stable_mosaic.version = 11 : i64} {
  func.func @_gcn31_fused_kernel(%arg0: memref<16x16xi8, #tpu.memory_space<vmem>>, %arg1: memref<16x4xf32, #tpu.memory_space<vmem>>, %arg2: memref<2x16xf32, #tpu.memory_space<vmem>>, %arg3: memref<32x128xf32, #tpu.memory_space<vmem>>, %arg4: memref<16x1xf32, #tpu.memory_space<vmem>>, %arg5: memref<2x1xf32, #tpu.memory_space<vmem>>) attributes {dimension_semantics = [], scalar_prefetch = 0 : i64, scratch_operands = 0 : i64, tpu.core_type = #tpu.core_type<tc>} {
    %c0 = arith.constant 0 : index
    %c0_0 = arith.constant 0 : index
    %0 = vector.load %arg1[%c0, %c0_0] : memref<16x4xf32, #tpu.memory_space<vmem>>, vector<16x4xf32>
    %1 = arith.truncf %0 : vector<16x4xf32> to vector<16x4xbf16>
    %c0_1 = arith.constant 0 : index
    %c0_2 = arith.constant 0 : index
    %2 = vector.load %arg0[%c0_1, %c0_2] : memref<16x16xi8, #tpu.memory_space<vmem>>, vector<16x16xi8>
    %3 = arith.extsi %2 : vector<16x16xi8> to vector<16x16xi32>
    %4 = arith.sitofp %3 : vector<16x16xi32> to vector<16x16xf32>
    %cst = arith.constant 1.000000e+00 : f32
    %5 = vector.broadcast %cst : f32 to vector<16x16xf32>
    %6 = arith.subf %4, %5 : vector<16x16xf32>
    %cst_3 = arith.constant 1.000000e+30 : f32
    %7 = vector.broadcast %cst_3 : f32 to vector<16x16xf32>
    %8 = arith.mulf %6, %7 : vector<16x16xf32>
    %c0_4 = arith.constant 0 : index
    %c0_5 = arith.constant 0 : index
    %9 = vector.load %arg3[%c0_4, %c0_5] : memref<32x128xf32, #tpu.memory_space<vmem>>, vector<4x53xf32>
    %10 = arith.truncf %9 : vector<4x53xf32> to vector<4x53xbf16>
    %cst_6 = arith.constant dense<0.000000e+00> : vector<16x53xf32>
    %11 = tpu.matmul %1, %10, %cst_6 {dimension_numbers = #tpu.dot_dimension_numbers<[1], [0], [0], [1], [0, 0, 1, 1], [], []>} : vector<16x4xbf16>, vector<4x53xbf16>, vector<16x53xf32> -> vector<16x53xf32>
    %c0_7 = arith.constant 0 : index
    %c64 = arith.constant 64 : index
    %12 = vector.load %arg3[%c0_7, %c64] : memref<32x128xf32, #tpu.memory_space<vmem>>, vector<4x4xf32>
    %13 = arith.truncf %12 : vector<4x4xf32> to vector<4x4xbf16>
    %cst_8 = arith.constant dense<0.000000e+00> : vector<4x16xf32>
    %14 = tpu.matmul %13, %1, %cst_8 {dimension_numbers = #tpu.dot_dimension_numbers<[1], [1], [0], [0], [0, 0, 1, 0], [], []>} : vector<4x4xbf16>, vector<16x4xbf16>, vector<4x16xf32> -> vector<4x16xf32>
    %15 = vector.extract_strided_slice %11 {offsets = [0, 0], sizes = [16, 17], strides = [1, 1]} : vector<16x53xf32> to vector<16x17xf32>
    %16 = vector.extract_strided_slice %14 {offsets = [0, 0], sizes = [1, 16], strides = [1, 1]} : vector<4x16xf32> to vector<1x16xf32>
    %c27 = arith.constant 27 : index
    %c0_9 = arith.constant 0 : index
    %17 = vector.load %arg3[%c27, %c0_9] : memref<32x128xf32, #tpu.memory_space<vmem>>, vector<1x16xf32>
    %18 = vector.extract_strided_slice %15 {offsets = [0, 0], sizes = [16, 16], strides = [1, 1]} : vector<16x17xf32> to vector<16x16xf32>
    %19 = vector.extract_strided_slice %15 {offsets = [0, 16], sizes = [16, 1], strides = [1, 1]} : vector<16x17xf32> to vector<16x1xf32>
    %20 = vector.broadcast %19 : vector<16x1xf32> to vector<16x16xf32>
    %21 = vector.broadcast %16 : vector<1x16xf32> to vector<16x16xf32>
    %22 = arith.addf %20, %21 : vector<16x16xf32>
    %cst_10 = arith.constant 0.000000e+00 : f32
    %23 = vector.broadcast %cst_10 : f32 to vector<16x16xf32>
    %24 = arith.cmpf ogt, %22, %23 : vector<16x16xf32>
    %cst_11 = arith.constant 2.000000e-01 : f32
    %25 = vector.broadcast %cst_11 : f32 to vector<16x16xf32>
    %26 = arith.mulf %25, %22 : vector<16x16xf32>
    %27 = arith.select %24, %22, %26 : vector<16x16xi1>, vector<16x16xf32>
    %28 = arith.addf %27, %8 : vector<16x16xf32>
    %cst_12 = arith.constant dense<0xFF800000> : vector<16xf32>
    %29 = vector.multi_reduction <maximumf>, %28, %cst_12 [1] : vector<16x16xf32> to vector<16xf32>
    %30 = vector.shape_cast %29 : vector<16xf32> to vector<16x1xf32>
    %31 = vector.broadcast %30 : vector<16x1xf32> to vector<16x16xf32>
    %32 = arith.subf %28, %31 : vector<16x16xf32>
    %33 = math.exp %32 : vector<16x16xf32>
    %cst_13 = arith.constant dense<0.000000e+00> : vector<16xf32>
    %34 = vector.multi_reduction <add>, %33, %cst_13 [1] : vector<16x16xf32> to vector<16xf32>
    %35 = vector.shape_cast %34 : vector<16xf32> to vector<16x1xf32>
    %36 = tpu.reciprocal %35 {approx = true} : vector<16x1xf32> -> vector<16x1xf32>
    %37 = vector.broadcast %36 : vector<16x1xf32> to vector<16x16xf32>
    %38 = arith.mulf %33, %37 : vector<16x16xf32>
    %39 = arith.truncf %38 : vector<16x16xf32> to vector<16x16xbf16>
    %40 = arith.truncf %18 : vector<16x16xf32> to vector<16x16xbf16>
    %cst_14 = arith.constant dense<0.000000e+00> : vector<16x16xf32>
    %41 = tpu.matmul %39, %40, %cst_14 {dimension_numbers = #tpu.dot_dimension_numbers<[1], [0], [0], [1], [0, 0, 1, 1], [], []>} : vector<16x16xbf16>, vector<16x16xbf16>, vector<16x16xf32> -> vector<16x16xf32>
    %42 = vector.broadcast %17 : vector<1x16xf32> to vector<16x16xf32>
    %43 = arith.addf %41, %42 : vector<16x16xf32>
    %cst_15 = arith.constant 0.000000e+00 : f32
    %44 = vector.broadcast %cst_15 : f32 to vector<16x16xf32>
    %45 = arith.maximumf %43, %44 : vector<16x16xf32>
    %c27_16 = arith.constant 27 : index
    %c16 = arith.constant 16 : index
    %46 = vector.load %arg3[%c27_16, %c16] : memref<32x128xf32, #tpu.memory_space<vmem>>, vector<1x16xf32>
    %47 = arith.truncf %45 : vector<16x16xf32> to vector<16x16xbf16>
    %c8 = arith.constant 8 : index
    %c0_17 = arith.constant 0 : index
    %48 = vector.load %arg3[%c8, %c0_17] : memref<32x128xf32, #tpu.memory_space<vmem>>, vector<16x17xf32>
    %49 = arith.truncf %48 : vector<16x17xf32> to vector<16x17xbf16>
    %cst_18 = arith.constant dense<0.000000e+00> : vector<16x17xf32>
    %50 = tpu.matmul %47, %49, %cst_18 {dimension_numbers = #tpu.dot_dimension_numbers<[1], [0], [0], [1], [0, 0, 1, 1], [], []>} : vector<16x16xbf16>, vector<16x17xbf16>, vector<16x17xf32> -> vector<16x17xf32>
    %51 = vector.extract_strided_slice %11 {offsets = [0, 17], sizes = [16, 17], strides = [1, 1]} : vector<16x53xf32> to vector<16x17xf32>
    %52 = arith.addf %50, %51 : vector<16x17xf32>
    %c24 = arith.constant 24 : index
    %c0_19 = arith.constant 0 : index
    %53 = vector.load %arg3[%c24, %c0_19] : memref<32x128xf32, #tpu.memory_space<vmem>>, vector<1x16xf32>
    %54 = arith.truncf %53 : vector<1x16xf32> to vector<1x16xbf16>
    %cst_20 = arith.constant dense<0.000000e+00> : vector<1x16xf32>
    %55 = tpu.matmul %54, %47, %cst_20 {dimension_numbers = #tpu.dot_dimension_numbers<[1], [1], [0], [0], [0, 0, 1, 0], [], []>} : vector<1x16xbf16>, vector<16x16xbf16>, vector<1x16xf32> -> vector<1x16xf32>
    %56 = vector.extract_strided_slice %14 {offsets = [1, 0], sizes = [1, 16], strides = [1, 1]} : vector<4x16xf32> to vector<1x16xf32>
    %57 = arith.addf %55, %56 : vector<1x16xf32>
    %58 = vector.extract_strided_slice %52 {offsets = [0, 0], sizes = [16, 16], strides = [1, 1]} : vector<16x17xf32> to vector<16x16xf32>
    %59 = vector.extract_strided_slice %52 {offsets = [0, 16], sizes = [16, 1], strides = [1, 1]} : vector<16x17xf32> to vector<16x1xf32>
    %60 = vector.broadcast %59 : vector<16x1xf32> to vector<16x16xf32>
    %61 = vector.broadcast %57 : vector<1x16xf32> to vector<16x16xf32>
    %62 = arith.addf %60, %61 : vector<16x16xf32>
    %cst_21 = arith.constant 0.000000e+00 : f32
    %63 = vector.broadcast %cst_21 : f32 to vector<16x16xf32>
    %64 = arith.cmpf ogt, %62, %63 : vector<16x16xf32>
    %cst_22 = arith.constant 2.000000e-01 : f32
    %65 = vector.broadcast %cst_22 : f32 to vector<16x16xf32>
    %66 = arith.mulf %65, %62 : vector<16x16xf32>
    %67 = arith.select %64, %62, %66 : vector<16x16xi1>, vector<16x16xf32>
    %68 = arith.addf %67, %8 : vector<16x16xf32>
    %cst_23 = arith.constant dense<0xFF800000> : vector<16xf32>
    %69 = vector.multi_reduction <maximumf>, %68, %cst_23 [1] : vector<16x16xf32> to vector<16xf32>
    %70 = vector.shape_cast %69 : vector<16xf32> to vector<16x1xf32>
    %71 = vector.broadcast %70 : vector<16x1xf32> to vector<16x16xf32>
    %72 = arith.subf %68, %71 : vector<16x16xf32>
    %73 = math.exp %72 : vector<16x16xf32>
    %cst_24 = arith.constant dense<0.000000e+00> : vector<16xf32>
    %74 = vector.multi_reduction <add>, %73, %cst_24 [1] : vector<16x16xf32> to vector<16xf32>
    %75 = vector.shape_cast %74 : vector<16xf32> to vector<16x1xf32>
    %76 = tpu.reciprocal %75 {approx = true} : vector<16x1xf32> -> vector<16x1xf32>
    %77 = vector.broadcast %76 : vector<16x1xf32> to vector<16x16xf32>
    %78 = arith.mulf %73, %77 : vector<16x16xf32>
    %79 = arith.truncf %78 : vector<16x16xf32> to vector<16x16xbf16>
    %80 = arith.truncf %58 : vector<16x16xf32> to vector<16x16xbf16>
    %cst_25 = arith.constant dense<0.000000e+00> : vector<16x16xf32>
    %81 = tpu.matmul %79, %80, %cst_25 {dimension_numbers = #tpu.dot_dimension_numbers<[1], [0], [0], [1], [0, 0, 1, 1], [], []>} : vector<16x16xbf16>, vector<16x16xbf16>, vector<16x16xf32> -> vector<16x16xf32>
    %82 = vector.broadcast %46 : vector<1x16xf32> to vector<16x16xf32>
    %83 = arith.addf %81, %82 : vector<16x16xf32>
    %cst_26 = arith.constant 0.000000e+00 : f32
    %84 = vector.broadcast %cst_26 : f32 to vector<16x16xf32>
    %85 = arith.maximumf %83, %84 : vector<16x16xf32>
    %c27_27 = arith.constant 27 : index
    %c32 = arith.constant 32 : index
    %86 = vector.load %arg3[%c27_27, %c32] : memref<32x128xf32, #tpu.memory_space<vmem>>, vector<1x16xf32>
    %87 = arith.truncf %85 : vector<16x16xf32> to vector<16x16xbf16>
    %c8_28 = arith.constant 8 : index
    %c17 = arith.constant 17 : index
    %88 = vector.load %arg3[%c8_28, %c17] : memref<32x128xf32, #tpu.memory_space<vmem>>, vector<16x17xf32>
    %89 = arith.truncf %88 : vector<16x17xf32> to vector<16x17xbf16>
    %cst_29 = arith.constant dense<0.000000e+00> : vector<16x17xf32>
    %90 = tpu.matmul %87, %89, %cst_29 {dimension_numbers = #tpu.dot_dimension_numbers<[1], [0], [0], [1], [0, 0, 1, 1], [], []>} : vector<16x16xbf16>, vector<16x17xbf16>, vector<16x17xf32> -> vector<16x17xf32>
    %91 = vector.extract_strided_slice %11 {offsets = [0, 34], sizes = [16, 17], strides = [1, 1]} : vector<16x53xf32> to vector<16x17xf32>
    %92 = arith.addf %90, %91 : vector<16x17xf32>
    %c25 = arith.constant 25 : index
    %c0_30 = arith.constant 0 : index
    %93 = vector.load %arg3[%c25, %c0_30] : memref<32x128xf32, #tpu.memory_space<vmem>>, vector<1x16xf32>
    %94 = arith.truncf %93 : vector<1x16xf32> to vector<1x16xbf16>
    %cst_31 = arith.constant dense<0.000000e+00> : vector<1x16xf32>
    %95 = tpu.matmul %94, %87, %cst_31 {dimension_numbers = #tpu.dot_dimension_numbers<[1], [1], [0], [0], [0, 0, 1, 0], [], []>} : vector<1x16xbf16>, vector<16x16xbf16>, vector<1x16xf32> -> vector<1x16xf32>
    %96 = vector.extract_strided_slice %14 {offsets = [2, 0], sizes = [1, 16], strides = [1, 1]} : vector<4x16xf32> to vector<1x16xf32>
    %97 = arith.addf %95, %96 : vector<1x16xf32>
    %98 = vector.extract_strided_slice %92 {offsets = [0, 0], sizes = [16, 16], strides = [1, 1]} : vector<16x17xf32> to vector<16x16xf32>
    %99 = vector.extract_strided_slice %92 {offsets = [0, 16], sizes = [16, 1], strides = [1, 1]} : vector<16x17xf32> to vector<16x1xf32>
    %100 = vector.broadcast %99 : vector<16x1xf32> to vector<16x16xf32>
    %101 = vector.broadcast %97 : vector<1x16xf32> to vector<16x16xf32>
    %102 = arith.addf %100, %101 : vector<16x16xf32>
    %cst_32 = arith.constant 0.000000e+00 : f32
    %103 = vector.broadcast %cst_32 : f32 to vector<16x16xf32>
    %104 = arith.cmpf ogt, %102, %103 : vector<16x16xf32>
    %cst_33 = arith.constant 2.000000e-01 : f32
    %105 = vector.broadcast %cst_33 : f32 to vector<16x16xf32>
    %106 = arith.mulf %105, %102 : vector<16x16xf32>
    %107 = arith.select %104, %102, %106 : vector<16x16xi1>, vector<16x16xf32>
    %108 = arith.addf %107, %8 : vector<16x16xf32>
    %cst_34 = arith.constant dense<0xFF800000> : vector<16xf32>
    %109 = vector.multi_reduction <maximumf>, %108, %cst_34 [1] : vector<16x16xf32> to vector<16xf32>
    %110 = vector.shape_cast %109 : vector<16xf32> to vector<16x1xf32>
    %111 = vector.broadcast %110 : vector<16x1xf32> to vector<16x16xf32>
    %112 = arith.subf %108, %111 : vector<16x16xf32>
    %113 = math.exp %112 : vector<16x16xf32>
    %cst_35 = arith.constant dense<0.000000e+00> : vector<16xf32>
    %114 = vector.multi_reduction <add>, %113, %cst_35 [1] : vector<16x16xf32> to vector<16xf32>
    %115 = vector.shape_cast %114 : vector<16xf32> to vector<16x1xf32>
    %116 = tpu.reciprocal %115 {approx = true} : vector<16x1xf32> -> vector<16x1xf32>
    %117 = vector.broadcast %116 : vector<16x1xf32> to vector<16x16xf32>
    %118 = arith.mulf %113, %117 : vector<16x16xf32>
    %119 = arith.truncf %118 : vector<16x16xf32> to vector<16x16xbf16>
    %120 = arith.truncf %98 : vector<16x16xf32> to vector<16x16xbf16>
    %cst_36 = arith.constant dense<0.000000e+00> : vector<16x16xf32>
    %121 = tpu.matmul %119, %120, %cst_36 {dimension_numbers = #tpu.dot_dimension_numbers<[1], [0], [0], [1], [0, 0, 1, 1], [], []>} : vector<16x16xbf16>, vector<16x16xbf16>, vector<16x16xf32> -> vector<16x16xf32>
    %122 = vector.broadcast %86 : vector<1x16xf32> to vector<16x16xf32>
    %123 = arith.addf %121, %122 : vector<16x16xf32>
    %cst_37 = arith.constant 0.000000e+00 : f32
    %124 = vector.broadcast %cst_37 : f32 to vector<16x16xf32>
    %125 = arith.maximumf %123, %124 : vector<16x16xf32>
    %c27_38 = arith.constant 27 : index
    %c48 = arith.constant 48 : index
    %126 = vector.load %arg3[%c27_38, %c48] : memref<32x128xf32, #tpu.memory_space<vmem>>, vector<1x1xf32>
    %127 = arith.truncf %125 : vector<16x16xf32> to vector<16x16xbf16>
    %c8_39 = arith.constant 8 : index
    %c34 = arith.constant 34 : index
    %128 = vector.load %arg3[%c8_39, %c34] : memref<32x128xf32, #tpu.memory_space<vmem>>, vector<16x2xf32>
    %129 = arith.truncf %128 : vector<16x2xf32> to vector<16x2xbf16>
    %cst_40 = arith.constant dense<0.000000e+00> : vector<16x2xf32>
    %130 = tpu.matmul %127, %129, %cst_40 {dimension_numbers = #tpu.dot_dimension_numbers<[1], [0], [0], [1], [0, 0, 1, 1], [], []>} : vector<16x16xbf16>, vector<16x2xbf16>, vector<16x2xf32> -> vector<16x2xf32>
    %131 = vector.extract_strided_slice %11 {offsets = [0, 51], sizes = [16, 2], strides = [1, 1]} : vector<16x53xf32> to vector<16x2xf32>
    %132 = arith.addf %130, %131 : vector<16x2xf32>
    %c26 = arith.constant 26 : index
    %c0_41 = arith.constant 0 : index
    %133 = vector.load %arg3[%c26, %c0_41] : memref<32x128xf32, #tpu.memory_space<vmem>>, vector<1x16xf32>
    %134 = arith.truncf %133 : vector<1x16xf32> to vector<1x16xbf16>
    %cst_42 = arith.constant dense<0.000000e+00> : vector<1x16xf32>
    %135 = tpu.matmul %134, %127, %cst_42 {dimension_numbers = #tpu.dot_dimension_numbers<[1], [1], [0], [0], [0, 0, 1, 0], [], []>} : vector<1x16xbf16>, vector<16x16xbf16>, vector<1x16xf32> -> vector<1x16xf32>
    %136 = vector.extract_strided_slice %14 {offsets = [3, 0], sizes = [1, 16], strides = [1, 1]} : vector<4x16xf32> to vector<1x16xf32>
    %137 = arith.addf %135, %136 : vector<1x16xf32>
    %138 = vector.extract_strided_slice %132 {offsets = [0, 0], sizes = [16, 1], strides = [1, 1]} : vector<16x2xf32> to vector<16x1xf32>
    %139 = vector.extract_strided_slice %132 {offsets = [0, 1], sizes = [16, 1], strides = [1, 1]} : vector<16x2xf32> to vector<16x1xf32>
    %140 = vector.broadcast %139 : vector<16x1xf32> to vector<16x16xf32>
    %141 = vector.broadcast %137 : vector<1x16xf32> to vector<16x16xf32>
    %142 = arith.addf %140, %141 : vector<16x16xf32>
    %cst_43 = arith.constant 0.000000e+00 : f32
    %143 = vector.broadcast %cst_43 : f32 to vector<16x16xf32>
    %144 = arith.cmpf ogt, %142, %143 : vector<16x16xf32>
    %cst_44 = arith.constant 2.000000e-01 : f32
    %145 = vector.broadcast %cst_44 : f32 to vector<16x16xf32>
    %146 = arith.mulf %145, %142 : vector<16x16xf32>
    %147 = arith.select %144, %142, %146 : vector<16x16xi1>, vector<16x16xf32>
    %148 = arith.addf %147, %8 : vector<16x16xf32>
    %cst_45 = arith.constant dense<0xFF800000> : vector<16xf32>
    %149 = vector.multi_reduction <maximumf>, %148, %cst_45 [1] : vector<16x16xf32> to vector<16xf32>
    %150 = vector.shape_cast %149 : vector<16xf32> to vector<16x1xf32>
    %151 = vector.broadcast %150 : vector<16x1xf32> to vector<16x16xf32>
    %152 = arith.subf %148, %151 : vector<16x16xf32>
    %153 = math.exp %152 : vector<16x16xf32>
    %cst_46 = arith.constant dense<0.000000e+00> : vector<16xf32>
    %154 = vector.multi_reduction <add>, %153, %cst_46 [1] : vector<16x16xf32> to vector<16xf32>
    %155 = vector.shape_cast %154 : vector<16xf32> to vector<16x1xf32>
    %156 = tpu.reciprocal %155 {approx = true} : vector<16x1xf32> -> vector<16x1xf32>
    %157 = vector.broadcast %156 : vector<16x1xf32> to vector<16x16xf32>
    %158 = arith.mulf %153, %157 : vector<16x16xf32>
    %159 = arith.truncf %158 : vector<16x16xf32> to vector<16x16xbf16>
    %160 = arith.truncf %138 : vector<16x1xf32> to vector<16x1xbf16>
    %cst_47 = arith.constant dense<0.000000e+00> : vector<16x1xf32>
    %161 = tpu.matmul %159, %160, %cst_47 {dimension_numbers = #tpu.dot_dimension_numbers<[1], [0], [0], [1], [0, 0, 1, 1], [], []>} : vector<16x16xbf16>, vector<16x1xbf16>, vector<16x1xf32> -> vector<16x1xf32>
    %162 = vector.broadcast %126 : vector<1x1xf32> to vector<16x1xf32>
    %163 = arith.addf %161, %162 : vector<16x1xf32>
    %cst_48 = arith.constant 0.000000e+00 : f32
    %164 = vector.broadcast %cst_48 : f32 to vector<16x1xf32>
    %165 = arith.maximumf %163, %164 : vector<16x1xf32>
    %c0_49 = arith.constant 0 : index
    %c0_50 = arith.constant 0 : index
    %166 = vector.load %arg4[%c0_49, %c0_50] : memref<16x1xf32, #tpu.memory_space<vmem>>, vector<16x1xf32>
    tpu.vector_store %arg4[%c0_49, %c0_50], %165 {strides = array<i32>} : memref<16x1xf32, #tpu.memory_space<vmem>>, vector<16x1xf32>,
    %c0_51 = arith.constant 0 : index
    %c0_52 = arith.constant 0 : index
    %167 = vector.load %arg2[%c0_51, %c0_52] : memref<2x16xf32, #tpu.memory_space<vmem>>, vector<2x16xf32>
    %168 = arith.truncf %167 : vector<2x16xf32> to vector<2x16xbf16>
    %169 = arith.truncf %125 : vector<16x16xf32> to vector<16x16xbf16>
    %cst_53 = arith.constant dense<0.000000e+00> : vector<2x16xf32>
    %170 = tpu.matmul %168, %169, %cst_53 {dimension_numbers = #tpu.dot_dimension_numbers<[1], [0], [0], [1], [0, 0, 1, 1], [], []>} : vector<2x16xbf16>, vector<16x16xbf16>, vector<2x16xf32> -> vector<2x16xf32>
    %171 = arith.truncf %170 : vector<2x16xf32> to vector<2x16xbf16>
    %c8_54 = arith.constant 8 : index
    %c40 = arith.constant 40 : index
    %172 = vector.load %arg3[%c8_54, %c40] : memref<32x128xf32, #tpu.memory_space<vmem>>, vector<16x16xf32>
    %173 = arith.truncf %172 : vector<16x16xf32> to vector<16x16xbf16>
    %cst_55 = arith.constant dense<0.000000e+00> : vector<2x16xf32>
    %174 = tpu.matmul %171, %173, %cst_55 {dimension_numbers = #tpu.dot_dimension_numbers<[1], [0], [0], [1], [0, 0, 1, 1], [], []>} : vector<2x16xbf16>, vector<16x16xbf16>, vector<2x16xf32> -> vector<2x16xf32>
    %c27_56 = arith.constant 27 : index
    %c64_57 = arith.constant 64 : index
    %175 = vector.load %arg3[%c27_56, %c64_57] : memref<32x128xf32, #tpu.memory_space<vmem>>, vector<1x16xf32>
    %176 = vector.broadcast %175 : vector<1x16xf32> to vector<2x16xf32>
    %177 = arith.addf %174, %176 : vector<2x16xf32>
    %cst_58 = arith.constant 0.000000e+00 : f32
    %178 = vector.broadcast %cst_58 : f32 to vector<2x16xf32>
    %179 = arith.maximumf %177, %178 : vector<2x16xf32>
    %180 = arith.truncf %179 : vector<2x16xf32> to vector<2x16xbf16>
    %c8_59 = arith.constant 8 : index
    %c56 = arith.constant 56 : index
    %181 = vector.load %arg3[%c8_59, %c56] : memref<32x128xf32, #tpu.memory_space<vmem>>, vector<16x1xf32>
    %182 = arith.truncf %181 : vector<16x1xf32> to vector<16x1xbf16>
    %cst_60 = arith.constant dense<0.000000e+00> : vector<2x1xf32>
    %183 = tpu.matmul %180, %182, %cst_60 {dimension_numbers = #tpu.dot_dimension_numbers<[1], [0], [0], [1], [0, 0, 1, 1], [], []>} : vector<2x16xbf16>, vector<16x1xbf16>, vector<2x1xf32> -> vector<2x1xf32>
    %c27_61 = arith.constant 27 : index
    %c80 = arith.constant 80 : index
    %184 = vector.load %arg3[%c27_61, %c80] : memref<32x128xf32, #tpu.memory_space<vmem>>, vector<1x1xf32>
    %185 = vector.broadcast %184 : vector<1x1xf32> to vector<2x1xf32>
    %186 = arith.addf %183, %185 : vector<2x1xf32>
    %c0_62 = arith.constant 0 : index
    %c0_63 = arith.constant 0 : index
    %187 = vector.load %arg5[%c0_62, %c0_63] : memref<2x1xf32, #tpu.memory_space<vmem>>, vector<2x1xf32>
    tpu.vector_store %arg5[%c0_62, %c0_63], %186 {strides = array<i32>} : memref<2x1xf32, #tpu.memory_space<vmem>>, vector<2x1xf32>,
    return
  }
}

</mosaic_0001>

<llo_original>
// kernel: gcn31_forward.1
$region0: #{gcn31_forward.1}
  #allocation0 [shape = 'u32[]', space=smem, size = 0x4, offset = 0x4, fixed_abs, tag = 'smem constant byte address 0x4 - core index']
  #allocation1 [shape = 'u32[144,128]{1,0:T(1,128)}', space=vmem, size = 0x12000, scoped, tag = 'internal scratch']
  %s0 = inlined_call_operand.vmem [shape: s8[16,16], index: 0, kind: input, shape index: {}]
  %s1 = inlined_call_operand.vmem [shape: f32[16,4], index: 1, kind: input, shape index: {}]
  %s2 = inlined_call_operand.vmem [shape: f32[2,16], index: 2, kind: input, shape index: {}]
  %s3 = inlined_call_operand.vmem [shape: f32[32,128], index: 3, kind: input, shape index: {}]
  %s4 = inlined_call_operand.vmem [shape: f32[16,1], index: 4, kind: output, shape index: {0}]
  %s5 = inlined_call_operand.vmem [shape: f32[2,1], index: 5, kind: output, shape index: {1}]
  %6 = xla_tuple %s4, %s5
  %s7 = sld [smem:[#allocation0]]
  $region34: #{gcn31_forward.1} parent=0
    _
  %s9 = ssub.s32 1, %s7
  %s10 = scalar_select 0, %s9, %s7
  // Predicated region
  $region2: #{gcn31_forward.1} parent=0 // pred_check
    _
  $region3: #{gcn31_forward.1} parent=0 // pred_check_branch
    %12 = sbr.rel (0) target = $region5
  $region4: #{gcn31_forward.1} parent=0 // pred_region
    _
  $region5: #{gcn31_forward.1} parent=0 // pred_fallthru
    _
  // Predicated region
  $region6: #{gcn31_forward.1} parent=0 // pred_check
    _
  $region7: #{gcn31_forward.1} parent=0 // pred_check_branch
    %14 = sbr.rel (0) target = $region9
  $region8: #{gcn31_forward.1} parent=0 // pred_region
    _
  $region9: #{gcn31_forward.1} parent=0 // pred_fallthru
    _
  // Predicated region
  $region10: #{gcn31_forward.1} parent=0 // pred_check
    _
  $region11: #{gcn31_forward.1} parent=0 // pred_check_branch
    %16 = sbr.rel (0) target = $region13
  $region12: #{gcn31_forward.1} parent=0 // pred_region
    _
  $region13: #{gcn31_forward.1} parent=0 // pred_fallthru
    _
  // Predicated region
  $region14: #{gcn31_forward.1} parent=0 // pred_check
    _
  $region15: #{gcn31_forward.1} parent=0 // pred_check_branch
    %18 = sbr.rel (0) target = $region17
  $region16: #{gcn31_forward.1} parent=0 // pred_region
    _
  $region17: #{gcn31_forward.1} parent=0 // pred_fallthru
    _
  %v20 = vld [vmem:[%s1] sm:$0xff]
  %v21 = vld [vmem:[%s1 + $0x8] sm:$0xff]
  %v22 = vpack.c.bf16 %v21, %v20
  %v23 = vld [vmem:[%s0] sm:$0x3]
  %v24 = vld [vmem:[%s0 + $0x2] sm:$0x3]
  %v25 = vunpack.c.0.s8 %v23
  %v26 = vunpack.c.0.s8 %v24
  %v27 = vcvt.s32.f32 %v25
  %v28 = vcvt.s32.f32 %v26
  %v29 = vsub.f32 %v27, 1.0
  %v30 = vsub.f32 %v28, 1.0
  %v31 = vmul.f32 %v29, 1e+30
  %v32 = vmul.f32 %v30, 1e+30
  %v33 = vld [vmem:[%s3] sm:$0xf]
  %v34 = vpack.c.bf16 %v33, %v33
  %vm35 = vcmask 31744
  %v37 = vsel %vm35, %v22, 0
  %vm39 = vcmask 1041408
  %v41 = vsel %vm39, %v34, 0
  %43 = vmatprep.subr.bf16.mxu0 0
  %44 = vmatpush1.bf16.msra.mxu0 %v41
  %45 = vmatprep.subr.bf16.mxu0 0
  %46 = vmatpush1.bf16.msra.mxu0 0
  %47 = vmatprep.subr.bf16.mxu0 0
  %48 = vmatpush1.bf16.msra.mxu0 0
  %49 = vmatprep.subr.bf16.mxu0 0
  %50 = vmatpush1.bf16.msra.mxu0 0
  %51 = vmatprep.subr.bf16.mxu0 0
  %52 = vmatpush1.bf16.msra.mxu0 0
  %53 = vmatprep.subr.bf16.mxu0 0
  %54 = vmatpush1.bf16.msra.mxu0 0
  %55 = vmatprep.subr.bf16.mxu0 0
  %56 = vmatpush1.bf16.msra.mxu0 0
  %57 = vmatprep.subr.bf16.mxu0 0
  %58 = vmatpush1.bf16.msra.mxu0 0
  %59 = vmatprep.subr.bf16.mxu0 0
  %60 = vmatpush1.bf16.msra.mxu0 0
  %61 = vmatprep.subr.bf16.mxu0 0
  %62 = vmatpush1.bf16.msra.mxu0 0
  %63 = vmatprep.subr.bf16.mxu0 0
  %64 = vmatpush1.bf16.msra.mxu0 0
  %65 = vmatprep.subr.bf16.mxu0 0
  %66 = vmatpush1.bf16.msra.mxu0 0
  %67 = vmatprep.subr.bf16.mxu0 0
  %68 = vmatpush1.bf16.msra.mxu0 0
  %69 = vmatprep.subr.bf16.mxu0 0
  %70 = vmatpush1.bf16.msra.mxu0 0
  %71 = vmatprep.subr.bf16.mxu0 0
  %72 = vmatpush1.bf16.msra.mxu0 0
  %73 = vmatprep.subr.bf16.mxu0 0
  %74 = vmatpush1.bf16.msra.mxu0 0
  %75 = vmatprep.mubr.bf16.mxu0 0
  %76 = vmatmul.mubr.bf16.gmra.mrb[0].mxu0 %v37
  %v77 = vpop.f32.mrb[0].mxu0
  %v78 = vadd.f32 0.0, %v77
  %v79 = vpop.f32.mrb[0].mxu0
  %v80 = vpop.f32.mrb[0].mxu0
  %v81 = vadd.f32 0.0, %v80
  %v82 = vpop.f32.mrb[0].mxu0
  %83 = vdwg.mxu0
  %85 = vrot.lane.b32.xlu0 %v34, 64
  %v86 = vpop.permute.xlu0 %85
  %v88 = vsel %vm35, %v86, 0
  %90 = vmatprep.subr.bf16.mxu0 0
  %91 = vmatpush1.bf16.xpose.msra.mxu0 %v37
  %92 = vmatprep.subr.bf16.mxu0 0
  %93 = vmatpush1.bf16.xpose.msra.mxu0 0
  %94 = vmatprep.subr.bf16.mxu0 0
  %95 = vmatpush1.bf16.xpose.msra.mxu0 0
  %96 = vmatprep.subr.bf16.mxu0 0
  %97 = vmatpush1.bf16.xpose.msra.mxu0 0
  %98 = vmatprep.subr.bf16.mxu0 0
  %99 = vmatpush1.bf16.xpose.msra.mxu0 0
  %100 = vmatprep.subr.bf16.mxu0 0
  %101 = vmatpush1.bf16.xpose.msra.mxu0 0
  %102 = vmatprep.subr.bf16.mxu0 0
  %103 = vmatpush1.bf16.xpose.msra.mxu0 0
  %104 = vmatprep.subr.bf16.mxu0 0
  %105 = vmatpush1.bf16.xpose.msra.mxu0 0
  %106 = vmatprep.subr.bf16.mxu0 0
  %107 = vmatpush1.bf16.xpose.msra.mxu0 0
  %108 = vmatprep.subr.bf16.mxu0 0
  %109 = vmatpush1.bf16.xpose.msra.mxu0 0
  %110 = vmatprep.subr.bf16.mxu0 0
  %111 = vmatpush1.bf16.xpose.msra.mxu0 0
  %112 = vmatprep.subr.bf16.mxu0 0
  %113 = vmatpush1.bf16.xpose.msra.mxu0 0
  %114 = vmatprep.subr.bf16.mxu0 0
  %115 = vmatpush1.bf16.xpose.msra.mxu0 0
  %116 = vmatprep.subr.bf16.mxu0 0
  %117 = vmatpush1.bf16.xpose.msra.mxu0 0
  %118 = vmatprep.subr.bf16.mxu0 0
  %119 = vmatpush1.bf16.xpose.msra.mxu0 0
  %120 = vmatprep.subr.bf16.mxu0 0
  %121 = vmatpush1.bf16.xpose.msra.mxu0 0
  %122 = vmatprep.mubr.bf16.mxu0 0
  %123 = vmatmul.mubr.bf16.gmra.mrb[0].mxu0 %v88
  %v124 = vpop.f32.mrb[0].mxu0
  %v125 = vadd.f32 0.0, %v124
  %v126 = vpop.f32.mrb[0].mxu0
  %v127 = vpop.f32.mrb[0].mxu0
  %v128 = vpop.f32.mrb[0].mxu0
  %129 = vdwg.mxu0
  %v130 = vld [vmem:[%s3 + $0x1b] sm:$0x1]
  %132 = vset.pattern.permute.xlu0 16
  %133 = vperm.xlu0 %132, %v78
  %v134 = vpop.permute.xlu0 %133
  %137 = vset.pattern.permute.xlu0 16
  %138 = vperm.xlu0 %137, %v81
  %v139 = vpop.permute.xlu0 %138
  %v141 = vlaneseq
  %v142 = vshrl.u32 %v141, 7
  %v143 = vsub.s32 0, %v142
  %v144 = vrot.slane %v125, %v143
  %v145 = vadd.f32 %v134, %v144
  %v146 = vadd.f32 %v139, %v144
  %vm147 = vcmp.gt.f32.partialorder %v145, 0.0
  %vm148 = vcmp.gt.f32.partialorder %v146, 0.0
  %v149 = vmul.f32 %v145, 0.2
  %v150 = vmul.f32 %v146, 0.2
  %v151 = vsel %vm147, %v145, %v149
  %v152 = vsel %vm148, %v146, %v150
  %v153 = vadd.f32 %v151, %v31
  %v154 = vadd.f32 %v152, %v32
  %vm155 = vcmask 130048
  %v156 = vsel %vm155, %v153, -inf
  %157 = vmax.xlane.f32.xlu0 %v156
  %v158 = vpop.xlane.xlu0 %157
  %v159 = vsel %vm155, %v154, -inf
  %160 = vmax.xlane.f32.xlu0 %v159
  %v161 = vpop.xlane.xlu0 %160
  %v162 = vsub.f32 %v153, %v158
  %v163 = vsub.f32 %v154, %v161
  %v164 = vmul.f32 %v162, 1.442695
  %v165 = vpow.pop %v164
  %v166 = vmul.f32 %v163, 1.442695
  %v167 = vpow.pop %v166
  %v168 = vsel %vm155, %v165, 0.0
  %169 = vadd.xlane.f32.xlu0 %v168
  %v170 = vpop.xlane.xlu0 %169
  %v171 = vsel %vm155, %v167, 0.0
  %172 = vadd.xlane.f32.xlu0 %v171
  %v173 = vpop.xlane.xlu0 %172
  %v174 = vrcp.pop %v170
  %v175 = vrcp.pop %v173
  %v176 = vmul.f32 %v165, %v174
  %v177 = vmul.f32 %v167, %v175
  %v178 = vpack.c.bf16 %v177, %v176
  %v179 = vpack.c.bf16 %v81, %v78
  %v180 = vlaneseq
  %v181 = vshrl.u32 %v180, 7
  %v182 = vsub.s32 0, %v181
  %v183 = vrot.slane %v130, %v182
  %v185 = vsel %vm155, %v178, 0
  %187 = vmatprep.subr.bf16.mxu0 0
  %188 = vmatpush1.bf16.msra.mxu0 %v179
  %189 = vmatprep.subr.bf16.mxu0 0
  %190 = vmatpush1.bf16.msra.mxu0 0
  %191 = vmatprep.subr.bf16.mxu0 0
  %192 = vmatpush1.bf16.msra.mxu0 0
  %193 = vmatprep.subr.bf16.mxu0 0
  %194 = vmatpush1.bf16.msra.mxu0 0
  %195 = vmatprep.subr.bf16.mxu0 0
  %196 = vmatpush1.bf16.msra.mxu0 0
  %197 = vmatprep.subr.bf16.mxu0 0
  %198 = vmatpush1.bf16.msra.mxu0 0
  %199 = vmatprep.subr.bf16.mxu0 0
  %200 = vmatpush1.bf16.msra.mxu0 0
  %201 = vmatprep.subr.bf16.mxu0 0
  %202 = vmatpush1.bf16.msra.mxu0 0
  %203 = vmatprep.subr.bf16.mxu0 0
  %204 = vmatpush1.bf16.msra.mxu0 0
  %205 = vmatprep.subr.bf16.mxu0 0
  %206 = vmatpush1.bf16.msra.mxu0 0
  %207 = vmatprep.subr.bf16.mxu0 0
  %208 = vmatpush1.bf16.msra.mxu0 0
  %209 = vmatprep.subr.bf16.mxu0 0
  %210 = vmatpush1.bf16.msra.mxu0 0
  %211 = vmatprep.subr.bf16.mxu0 0
  %212 = vmatpush1.bf16.msra.mxu0 0
  %213 = vmatprep.subr.bf16.mxu0 0
  %214 = vmatpush1.bf16.msra.mxu0 0
  %215 = vmatprep.subr.bf16.mxu0 0
  %216 = vmatpush1.bf16.msra.mxu0 0
  %217 = vmatprep.subr.bf16.mxu0 0
  %218 = vmatpush1.bf16.msra.mxu0 0
  %219 = vmatprep.mubr.bf16.mxu0 0
  %220 = vmatmul.mubr.bf16.gmra.mrb[0].mxu0 %v185
  %v221 = vpop.f32.mrb[0].mxu0
  %v222 = vadd.f32 %v183, %v221
  %v223 = vpop.f32.mrb[0].mxu0
  %v224 = vpop.f32.mrb[0].mxu0
  %v225 = vadd.f32 %v183, %v224
  %v226 = vpop.f32.mrb[0].mxu0
  %227 = vdwg.mxu0
  %v228 = vmax.f32 %v222, 0.0
  %v229 = vmax.f32 %v225, 0.0
  %v230 = vpack.c.bf16 %v229, %v228
  %v231 = vld [vmem:[%s3 + $0x8] sm:$0xff]
  %v232 = vld [vmem:[%s3 + $0x10] sm:$0xff]
  %v233 = vpack.c.bf16 %v232, %v231
  %234 = vrot.lane.b32.xlu0 %v78, 111
  %v235 = vpop.permute.xlu0 %234
  %236 = vrot.lane.b32.xlu0 %v81, 111
  %v237 = vpop.permute.xlu0 %236
  %v241 = vsel %vm155, %v230, 0
  %243 = vmatprep.subr.bf16.mxu0 0
  %244 = vmatpush1.bf16.msra.mxu0 %v233
  %245 = vmatprep.subr.bf16.mxu0 0
  %246 = vmatpush1.bf16.msra.mxu0 0
  %247 = vmatprep.subr.bf16.mxu0 0
  %248 = vmatpush1.bf16.msra.mxu0 0
  %249 = vmatprep.subr.bf16.mxu0 0
  %250 = vmatpush1.bf16.msra.mxu0 0
  %251 = vmatprep.subr.bf16.mxu0 0
  %252 = vmatpush1.bf16.msra.mxu0 0
  %253 = vmatprep.subr.bf16.mxu0 0
  %254 = vmatpush1.bf16.msra.mxu0 0
  %255 = vmatprep.subr.bf16.mxu0 0
  %256 = vmatpush1.bf16.msra.mxu0 0
  %257 = vmatprep.subr.bf16.mxu0 0
  %258 = vmatpush1.bf16.msra.mxu0 0
  %259 = vmatprep.subr.bf16.mxu0 0
  %260 = vmatpush1.bf16.msra.mxu0 0
  %261 = vmatprep.subr.bf16.mxu0 0
  %262 = vmatpush1.bf16.msra.mxu0 0
  %263 = vmatprep.subr.bf16.mxu0 0
  %264 = vmatpush1.bf16.msra.mxu0 0
  %265 = vmatprep.subr.bf16.mxu0 0
  %266 = vmatpush1.bf16.msra.mxu0 0
  %267 = vmatprep.subr.bf16.mxu0 0
  %268 = vmatpush1.bf16.msra.mxu0 0
  %269 = vmatprep.subr.bf16.mxu0 0
  %270 = vmatpush1.bf16.msra.mxu0 0
  %271 = vmatprep.subr.bf16.mxu0 0
  %272 = vmatpush1.bf16.msra.mxu0 0
  %273 = vmatprep.subr.bf16.mxu0 0
  %274 = vmatpush1.bf16.msra.mxu0 0
  %275 = vmatprep.mubr.bf16.mxu0 0
  %276 = vmatmul.mubr.bf16.gmra.mrb[0].mxu0 %v241
  %v277 = vpop.f32.mrb[0].mxu0
  %v278 = vadd.f32 %v235, %v277
  %v279 = vpop.f32.mrb[0].mxu0
  %v280 = vpop.f32.mrb[0].mxu0
  %v281 = vadd.f32 %v237, %v280
  %v282 = vpop.f32.mrb[0].mxu0
  %283 = vdwg.mxu0
  %v284 = vld [vmem:[%s3 + $0x18] sm:$0x1]
  %v285 = vpack.c.bf16 %v284, %v284
  %v287 = vrot.slane %v125, 1
  %v290 = vsel %vm155, %v285, 0
  %292 = vmatprep.subr.bf16.mxu0 0
  %293 = vmatpush1.bf16.xpose.msra.mxu0 %v241
  %294 = vmatprep.subr.bf16.mxu0 0
  %295 = vmatpush1.bf16.xpose.msra.mxu0 0
  %296 = vmatprep.subr.bf16.mxu0 0
  %297 = vmatpush1.bf16.xpose.msra.mxu0 0
  %298 = vmatprep.subr.bf16.mxu0 0
  %299 = vmatpush1.bf16.xpose.msra.mxu0 0
  %300 = vmatprep.subr.bf16.mxu0 0
  %301 = vmatpush1.bf16.xpose.msra.mxu0 0
  %302 = vmatprep.subr.bf16.mxu0 0
  %303 = vmatpush1.bf16.xpose.msra.mxu0 0
  %304 = vmatprep.subr.bf16.mxu0 0
  %305 = vmatpush1.bf16.xpose.msra.mxu0 0
  %306 = vmatprep.subr.bf16.mxu0 0
  %307 = vmatpush1.bf16.xpose.msra.mxu0 0
  %308 = vmatprep.subr.bf16.mxu0 0
  %309 = vmatpush1.bf16.xpose.msra.mxu0 0
  %310 = vmatprep.subr.bf16.mxu0 0
  %311 = vmatpush1.bf16.xpose.msra.mxu0 0
  %312 = vmatprep.subr.bf16.mxu0 0
  %313 = vmatpush1.bf16.xpose.msra.mxu0 0
  %314 = vmatprep.subr.bf16.mxu0 0
  %315 = vmatpush1.bf16.xpose.msra.mxu0 0
  %316 = vmatprep.subr.bf16.mxu0 0
  %317 = vmatpush1.bf16.xpose.msra.mxu0 0
  %318 = vmatprep.subr.bf16.mxu0 0
  %319 = vmatpush1.bf16.xpose.msra.mxu0 0
  %320 = vmatprep.subr.bf16.mxu0 0
  %321 = vmatpush1.bf16.xpose.msra.mxu0 0
  %322 = vmatprep.subr.bf16.mxu0 0
  %323 = vmatpush1.bf16.xpose.msra.mxu0 0
  %324 = vmatprep.mubr.bf16.mxu0 0
  %325 = vmatmul.mubr.bf16.gmra.mrb[0].mxu0 %v290
  %v326 = vpop.f32.mrb[0].mxu0
  %v327 = vadd.f32 %v287, %v326
  %v328 = vpop.f32.mrb[0].mxu0
  %v329 = vpop.f32.mrb[0].mxu0
  %v330 = vpop.f32.mrb[0].mxu0
  %331 = vdwg.mxu0
  %333 = vset.pattern.permute.xlu0 16
  %334 = vperm.xlu0 %333, %v278
  %v335 = vpop.permute.xlu0 %334
  %338 = vset.pattern.permute.xlu0 16
  %339 = vperm.xlu0 %338, %v281
  %v340 = vpop.permute.xlu0 %339
  %v342 = vlaneseq
  %v343 = vshrl.u32 %v342, 7
  %v344 = vsub.s32 0, %v343
  %v345 = vrot.slane %v327, %v344
  %v346 = vadd.f32 %v335, %v345
  %v347 = vadd.f32 %v340, %v345
  %vm348 = vcmp.gt.f32.partialorder %v346, 0.0
  %vm349 = vcmp.gt.f32.partialorder %v347, 0.0
  %v350 = vmul.f32 %v346, 0.2
  %v351 = vmul.f32 %v347, 0.2
  %v352 = vsel %vm348, %v346, %v350
  %v353 = vsel %vm349, %v347, %v351
  %v354 = vadd.f32 %v352, %v31
  %v355 = vadd.f32 %v353, %v32
  %v356 = vsel %vm155, %v354, -inf
  %357 = vmax.xlane.f32.xlu0 %v356
  %v358 = vpop.xlane.xlu0 %357
  %v359 = vsel %vm155, %v355, -inf
  %360 = vmax.xlane.f32.xlu0 %v359
  %v361 = vpop.xlane.xlu0 %360
  %v362 = vsub.f32 %v354, %v358
  %v363 = vsub.f32 %v355, %v361
  %v364 = vmul.f32 %v362, 1.442695
  %v365 = vpow.pop %v364
  %v366 = vmul.f32 %v363, 1.442695
  %v367 = vpow.pop %v366
  %v368 = vsel %vm155, %v365, 0.0
  %369 = vadd.xlane.f32.xlu0 %v368
  %v370 = vpop.xlane.xlu0 %369
  %v371 = vsel %vm155, %v367, 0.0
  %372 = vadd.xlane.f32.xlu0 %v371
  %v373 = vpop.xlane.xlu0 %372
  %v374 = vrcp.pop %v370
  %v375 = vrcp.pop %v373
  %v376 = vmul.f32 %v365, %v374
  %v377 = vmul.f32 %v367, %v375
  %v378 = vpack.c.bf16 %v377, %v376
  %v379 = vpack.c.bf16 %v281, %v278
  %381 = vrot.lane.b32.xlu0 %v183, 112
  %v382 = vpop.permute.xlu0 %381
  %v385 = vsel %vm155, %v378, 0
  %387 = vmatprep.subr.bf16.mxu0 0
  %388 = vmatpush1.bf16.msra.mxu0 %v379
  %389 = vmatprep.subr.bf16.mxu0 0
  %390 = vmatpush1.bf16.msra.mxu0 0
  %391 = vmatprep.subr.bf16.mxu0 0
  %392 = vmatpush1.bf16.msra.mxu0 0
  %393 = vmatprep.subr.bf16.mxu0 0
  %394 = vmatpush1.bf16.msra.mxu0 0
  %395 = vmatprep.subr.bf16.mxu0 0
  %396 = vmatpush1.bf16.msra.mxu0 0
  %397 = vmatprep.subr.bf16.mxu0 0
  %398 = vmatpush1.bf16.msra.mxu0 0
  %399 = vmatprep.subr.bf16.mxu0 0
  %400 = vmatpush1.bf16.msra.mxu0 0
  %401 = vmatprep.subr.bf16.mxu0 0
  %402 = vmatpush1.bf16.msra.mxu0 0
  %403 = vmatprep.subr.bf16.mxu0 0
  %404 = vmatpush1.bf16.msra.mxu0 0
  %405 = vmatprep.subr.bf16.mxu0 0
  %406 = vmatpush1.bf16.msra.mxu0 0
  %407 = vmatprep.subr.bf16.mxu0 0
  %408 = vmatpush1.bf16.msra.mxu0 0
  %409 = vmatprep.subr.bf16.mxu0 0
  %410 = vmatpush1.bf16.msra.mxu0 0
  %411 = vmatprep.subr.bf16.mxu0 0
  %412 = vmatpush1.bf16.msra.mxu0 0
  %413 = vmatprep.subr.bf16.mxu0 0
  %414 = vmatpush1.bf16.msra.mxu0 0
  %415 = vmatprep.subr.bf16.mxu0 0
  %416 = vmatpush1.bf16.msra.mxu0 0
  %417 = vmatprep.subr.bf16.mxu0 0
  %418 = vmatpush1.bf16.msra.mxu0 0
  %419 = vmatprep.mubr.bf16.mxu0 0
  %420 = vmatmul.mubr.bf16.gmra.mrb[0].mxu0 %v385
  %v421 = vpop.f32.mrb[0].mxu0
  %v422 = vadd.f32 %v382, %v421
  %v423 = vpop.f32.mrb[0].mxu0
  %v424 = vpop.f32.mrb[0].mxu0
  %v425 = vadd.f32 %v382, %v424
  %v426 = vpop.f32.mrb[0].mxu0
  %427 = vdwg.mxu0
  %v428 = vmax.f32 %v422, 0.0
  %v429 = vmax.f32 %v425, 0.0
  %v430 = vpack.c.bf16 %v429, %v428
  %432 = vrot.lane.b32.xlu0 %v233, 111
  %v433 = vpop.permute.xlu0 %432
  %435 = vrot.lane.b32.xlu0 %v78, 94
  %v436 = vpop.permute.xlu0 %435
  %437 = vrot.lane.b32.xlu0 %v81, 94
  %v438 = vpop.permute.xlu0 %437
  %v442 = vsel %vm155, %v430, 0
  %444 = vmatprep.subr.bf16.mxu0 0
  %445 = vmatpush1.bf16.msra.mxu0 %v433
  %446 = vmatprep.subr.bf16.mxu0 0
  %447 = vmatpush1.bf16.msra.mxu0 0
  %448 = vmatprep.subr.bf16.mxu0 0
  %449 = vmatpush1.bf16.msra.mxu0 0
  %450 = vmatprep.subr.bf16.mxu0 0
  %451 = vmatpush1.bf16.msra.mxu0 0
  %452 = vmatprep.subr.bf16.mxu0 0
  %453 = vmatpush1.bf16.msra.mxu0 0
  %454 = vmatprep.subr.bf16.mxu0 0
  %455 = vmatpush1.bf16.msra.mxu0 0
  %456 = vmatprep.subr.bf16.mxu0 0
  %457 = vmatpush1.bf16.msra.mxu0 0
  %458 = vmatprep.subr.bf16.mxu0 0
  %459 = vmatpush1.bf16.msra.mxu0 0
  %460 = vmatprep.subr.bf16.mxu0 0
  %461 = vmatpush1.bf16.msra.mxu0 0
  %462 = vmatprep.subr.bf16.mxu0 0
  %463 = vmatpush1.bf16.msra.mxu0 0
  %464 = vmatprep.subr.bf16.mxu0 0
  %465 = vmatpush1.bf16.msra.mxu0 0
  %466 = vmatprep.subr.bf16.mxu0 0
  %467 = vmatpush1.bf16.msra.mxu0 0
  %468 = vmatprep.subr.bf16.mxu0 0
  %469 = vmatpush1.bf16.msra.mxu0 0
  %470 = vmatprep.subr.bf16.mxu0 0
  %471 = vmatpush1.bf16.msra.mxu0 0
  %472 = vmatprep.subr.bf16.mxu0 0
  %473 = vmatpush1.bf16.msra.mxu0 0
  %474 = vmatprep.subr.bf16.mxu0 0
  %475 = vmatpush1.bf16.msra.mxu0 0
  %476 = vmatprep.mubr.bf16.mxu0 0
  %477 = vmatmul.mubr.bf16.gmra.mrb[0].mxu0 %v442
  %v478 = vpop.f32.mrb[0].mxu0
  %v479 = vadd.f32 %v436, %v478
  %v480 = vpop.f32.mrb[0].mxu0
  %v481 = vpop.f32.mrb[0].mxu0
  %v482 = vadd.f32 %v438, %v481
  %v483 = vpop.f32.mrb[0].mxu0
  %484 = vdwg.mxu0
  %v485 = vld [vmem:[%s3 + $0x19] sm:$0x1]
  %v486 = vpack.c.bf16 %v485, %v485
  %v487 = vrot.slane %v125, 2
  %v490 = vsel %vm155, %v486, 0
  %492 = vmatprep.subr.bf16.mxu0 0
  %493 = vmatpush1.bf16.xpose.msra.mxu0 %v442
  %494 = vmatprep.subr.bf16.mxu0 0
  %495 = vmatpush1.bf16.xpose.msra.mxu0 0
  %496 = vmatprep.subr.bf16.mxu0 0
  %497 = vmatpush1.bf16.xpose.msra.mxu0 0
  %498 = vmatprep.subr.bf16.mxu0 0
  %499 = vmatpush1.bf16.xpose.msra.mxu0 0
  %500 = vmatprep.subr.bf16.mxu0 0
  %501 = vmatpush1.bf16.xpose.msra.mxu0 0
  %502 = vmatprep.subr.bf16.mxu0 0
  %503 = vmatpush1.bf16.xpose.msra.mxu0 0
  %504 = vmatprep.subr.bf16.mxu0 0
  %505 = vmatpush1.bf16.xpose.msra.mxu0 0
  %506 = vmatprep.subr.bf16.mxu0 0
  %507 = vmatpush1.bf16.xpose.msra.mxu0 0
  %508 = vmatprep.subr.bf16.mxu0 0
  %509 = vmatpush1.bf16.xpose.msra.mxu0 0
  %510 = vmatprep.subr.bf16.mxu0 0
  %511 = vmatpush1.bf16.xpose.msra.mxu0 0
  %512 = vmatprep.subr.bf16.mxu0 0
  %513 = vmatpush1.bf16.xpose.msra.mxu0 0
  %514 = vmatprep.subr.bf16.mxu0 0
  %515 = vmatpush1.bf16.xpose.msra.mxu0 0
  %516 = vmatprep.subr.bf16.mxu0 0
  %517 = vmatpush1.bf16.xpose.msra.mxu0 0
  %518 = vmatprep.subr.bf16.mxu0 0
  %519 = vmatpush1.bf16.xpose.msra.mxu0 0
  %520 = vmatprep.subr.bf16.mxu0 0
  %521 = vmatpush1.bf16.xpose.msra.mxu0 0
  %522 = vmatprep.subr.bf16.mxu0 0
  %523 = vmatpush1.bf16.xpose.msra.mxu0 0
  %524 = vmatprep.mubr.bf16.mxu0 0
  %525 = vmatmul.mubr.bf16.gmra.mrb[0].mxu0 %v490
  %v526 = vpop.f32.mrb[0].mxu0
  %v527 = vadd.f32 %v487, %v526
  %v528 = vpop.f32.mrb[0].mxu0
  %v529 = vpop.f32.mrb[0].mxu0
  %v530 = vpop.f32.mrb[0].mxu0
  %531 = vdwg.mxu0
  %533 = vset.pattern.permute.xlu0 16
  %534 = vperm.xlu0 %533, %v479
  %v535 = vpop.permute.xlu0 %534
  %538 = vset.pattern.permute.xlu0 16
  %539 = vperm.xlu0 %538, %v482
  %v540 = vpop.permute.xlu0 %539
  %v542 = vlaneseq
  %v543 = vshrl.u32 %v542, 7
  %v544 = vsub.s32 0, %v543
  %v545 = vrot.slane %v527, %v544
  %v546 = vadd.f32 %v535, %v545
  %v547 = vadd.f32 %v540, %v545
  %vm548 = vcmp.gt.f32.partialorder %v546, 0.0
  %vm549 = vcmp.gt.f32.partialorder %v547, 0.0
  %v550 = vmul.f32 %v546, 0.2
  %v551 = vmul.f32 %v547, 0.2
  %v552 = vsel %vm548, %v546, %v550
  %v553 = vsel %vm549, %v547, %v551
  %v554 = vadd.f32 %v552, %v31
  %v555 = vadd.f32 %v553, %v32
  %v556 = vsel %vm155, %v554, -inf
  %557 = vmax.xlane.f32.xlu0 %v556
  %v558 = vpop.xlane.xlu0 %557
  %v559 = vsel %vm155, %v555, -inf
  %560 = vmax.xlane.f32.xlu0 %v559
  %v561 = vpop.xlane.xlu0 %560
  %v562 = vsub.f32 %v554, %v558
  %v563 = vsub.f32 %v555, %v561
  %v564 = vmul.f32 %v562, 1.442695
  %v565 = vpow.pop %v564
  %v566 = vmul.f32 %v563, 1.442695
  %v567 = vpow.pop %v566
  %v568 = vsel %vm155, %v565, 0.0
  %569 = vadd.xlane.f32.xlu0 %v568
  %v570 = vpop.xlane.xlu0 %569
  %v571 = vsel %vm155, %v567, 0.0
  %572 = vadd.xlane.f32.xlu0 %v571
  %v573 = vpop.xlane.xlu0 %572
  %v574 = vrcp.pop %v570
  %v575 = vrcp.pop %v573
  %v576 = vmul.f32 %v565, %v574
  %v577 = vmul.f32 %v567, %v575
  %v578 = vpack.c.bf16 %v577, %v576
  %v579 = vpack.c.bf16 %v482, %v479
  %580 = vrot.lane.b32.xlu0 %v183, 96
  %v581 = vpop.permute.xlu0 %580
  %v584 = vsel %vm155, %v578, 0
  %586 = vmatprep.subr.bf16.mxu0 0
  %587 = vmatpush1.bf16.msra.mxu0 %v579
  %588 = vmatprep.subr.bf16.mxu0 0
  %589 = vmatpush1.bf16.msra.mxu0 0
  %590 = vmatprep.subr.bf16.mxu0 0
  %591 = vmatpush1.bf16.msra.mxu0 0
  %592 = vmatprep.subr.bf16.mxu0 0
  %593 = vmatpush1.bf16.msra.mxu0 0
  %594 = vmatprep.subr.bf16.mxu0 0
  %595 = vmatpush1.bf16.msra.mxu0 0
  %596 = vmatprep.subr.bf16.mxu0 0
  %597 = vmatpush1.bf16.msra.mxu0 0
  %598 = vmatprep.subr.bf16.mxu0 0
  %599 = vmatpush1.bf16.msra.mxu0 0
  %600 = vmatprep.subr.bf16.mxu0 0
  %601 = vmatpush1.bf16.msra.mxu0 0
  %602 = vmatprep.subr.bf16.mxu0 0
  %603 = vmatpush1.bf16.msra.mxu0 0
  %604 = vmatprep.subr.bf16.mxu0 0
  %605 = vmatpush1.bf16.msra.mxu0 0
  %606 = vmatprep.subr.bf16.mxu0 0
  %607 = vmatpush1.bf16.msra.mxu0 0
  %608 = vmatprep.subr.bf16.mxu0 0
  %609 = vmatpush1.bf16.msra.mxu0 0
  %610 = vmatprep.subr.bf16.mxu0 0
  %611 = vmatpush1.bf16.msra.mxu0 0
  %612 = vmatprep.subr.bf16.mxu0 0
  %613 = vmatpush1.bf16.msra.mxu0 0
  %614 = vmatprep.subr.bf16.mxu0 0
  %615 = vmatpush1.bf16.msra.mxu0 0
  %616 = vmatprep.subr.bf16.mxu0 0
  %617 = vmatpush1.bf16.msra.mxu0 0
  %618 = vmatprep.mubr.bf16.mxu0 0
  %619 = vmatmul.mubr.bf16.gmra.mrb[0].mxu0 %v584
  %v620 = vpop.f32.mrb[0].mxu0
  %v621 = vadd.f32 %v581, %v620
  %v622 = vpop.f32.mrb[0].mxu0
  %v623 = vpop.f32.mrb[0].mxu0
  %v624 = vadd.f32 %v581, %v623
  %v625 = vpop.f32.mrb[0].mxu0
  %626 = vdwg.mxu0
  %v627 = vmax.f32 %v621, 0.0
  %v628 = vmax.f32 %v624, 0.0
  %v629 = vpack.c.bf16 %v628, %v627
  %630 = vrot.lane.b32.xlu0 %v233, 94
  %v631 = vpop.permute.xlu0 %630
  %633 = vrot.lane.b32.xlu0 %v78, 77
  %v634 = vpop.permute.xlu0 %633
  %635 = vrot.lane.b32.xlu0 %v81, 77
  %v636 = vpop.permute.xlu0 %635
  %v640 = vsel %vm155, %v629, 0
  %642 = vmatprep.subr.bf16.mxu0 0
  %643 = vmatpush1.bf16.msra.mxu0 %v631
  %644 = vmatprep.subr.bf16.mxu0 0
  %645 = vmatpush1.bf16.msra.mxu0 0
  %646 = vmatprep.subr.bf16.mxu0 0
  %647 = vmatpush1.bf16.msra.mxu0 0
  %648 = vmatprep.subr.bf16.mxu0 0
  %649 = vmatpush1.bf16.msra.mxu0 0
  %650 = vmatprep.subr.bf16.mxu0 0
  %651 = vmatpush1.bf16.msra.mxu0 0
  %652 = vmatprep.subr.bf16.mxu0 0
  %653 = vmatpush1.bf16.msra.mxu0 0
  %654 = vmatprep.subr.bf16.mxu0 0
  %655 = vmatpush1.bf16.msra.mxu0 0
  %656 = vmatprep.subr.bf16.mxu0 0
  %657 = vmatpush1.bf16.msra.mxu0 0
  %658 = vmatprep.subr.bf16.mxu0 0
  %659 = vmatpush1.bf16.msra.mxu0 0
  %660 = vmatprep.subr.bf16.mxu0 0
  %661 = vmatpush1.bf16.msra.mxu0 0
  %662 = vmatprep.subr.bf16.mxu0 0
  %663 = vmatpush1.bf16.msra.mxu0 0
  %664 = vmatprep.subr.bf16.mxu0 0
  %665 = vmatpush1.bf16.msra.mxu0 0
  %666 = vmatprep.subr.bf16.mxu0 0
  %667 = vmatpush1.bf16.msra.mxu0 0
  %668 = vmatprep.subr.bf16.mxu0 0
  %669 = vmatpush1.bf16.msra.mxu0 0
  %670 = vmatprep.subr.bf16.mxu0 0
  %671 = vmatpush1.bf16.msra.mxu0 0
  %672 = vmatprep.subr.bf16.mxu0 0
  %673 = vmatpush1.bf16.msra.mxu0 0
  %674 = vmatprep.mubr.bf16.mxu0 0
  %675 = vmatmul.mubr.bf16.gmra.mrb[0].mxu0 %v640
  %v676 = vpop.f32.mrb[0].mxu0
  %v677 = vadd.f32 %v634, %v676
  %v678 = vpop.f32.mrb[0].mxu0
  %v679 = vpop.f32.mrb[0].mxu0
  %v680 = vadd.f32 %v636, %v679
  %v681 = vpop.f32.mrb[0].mxu0
  %682 = vdwg.mxu0
  %v683 = vld [vmem:[%s3 + $0x1a] sm:$0x1]
  %v684 = vpack.c.bf16 %v683, %v683
  %v685 = vrot.slane %v125, 3
  %v688 = vsel %vm155, %v684, 0
  %690 = vmatprep.subr.bf16.mxu0 0
  %691 = vmatpush1.bf16.xpose.msra.mxu0 %v640
  %692 = vmatprep.subr.bf16.mxu0 0
  %693 = vmatpush1.bf16.xpose.msra.mxu0 0
  %694 = vmatprep.subr.bf16.mxu0 0
  %695 = vmatpush1.bf16.xpose.msra.mxu0 0
  %696 = vmatprep.subr.bf16.mxu0 0
  %697 = vmatpush1.bf16.xpose.msra.mxu0 0
  %698 = vmatprep.subr.bf16.mxu0 0
  %699 = vmatpush1.bf16.xpose.msra.mxu0 0
  %700 = vmatprep.subr.bf16.mxu0 0
  %701 = vmatpush1.bf16.xpose.msra.mxu0 0
  %702 = vmatprep.subr.bf16.mxu0 0
  %703 = vmatpush1.bf16.xpose.msra.mxu0 0
  %704 = vmatprep.subr.bf16.mxu0 0
  %705 = vmatpush1.bf16.xpose.msra.mxu0 0
  %706 = vmatprep.subr.bf16.mxu0 0
  %707 = vmatpush1.bf16.xpose.msra.mxu0 0
  %708 = vmatprep.subr.bf16.mxu0 0
  %709 = vmatpush1.bf16.xpose.msra.mxu0 0
  %710 = vmatprep.subr.bf16.mxu0 0
  %711 = vmatpush1.bf16.xpose.msra.mxu0 0
  %712 = vmatprep.subr.bf16.mxu0 0
  %713 = vmatpush1.bf16.xpose.msra.mxu0 0
  %714 = vmatprep.subr.bf16.mxu0 0
  %715 = vmatpush1.bf16.xpose.msra.mxu0 0
  %716 = vmatprep.subr.bf16.mxu0 0
  %717 = vmatpush1.bf16.xpose.msra.mxu0 0
  %718 = vmatprep.subr.bf16.mxu0 0
  %719 = vmatpush1.bf16.xpose.msra.mxu0 0
  %720 = vmatprep.subr.bf16.mxu0 0
  %721 = vmatpush1.bf16.xpose.msra.mxu0 0
  %722 = vmatprep.mubr.bf16.mxu0 0
  %723 = vmatmul.mubr.bf16.gmra.mrb[0].mxu0 %v688
  %v724 = vpop.f32.mrb[0].mxu0
  %v725 = vadd.f32 %v685, %v724
  %v726 = vpop.f32.mrb[0].mxu0
  %v727 = vpop.f32.mrb[0].mxu0
  %v728 = vpop.f32.mrb[0].mxu0
  %729 = vdwg.mxu0
  %731 = vset.pattern.permute.xlu0 1
  %732 = vperm.xlu0 %731, %v677
  %v733 = vpop.permute.xlu0 %732
  %736 = vset.pattern.permute.xlu0 1
  %737 = vperm.xlu0 %736, %v680
  %v738 = vpop.permute.xlu0 %737
  %v740 = vlaneseq
  %v741 = vshrl.u32 %v740, 7
  %v742 = vsub.s32 0, %v741
  %v743 = vrot.slane %v725, %v742
  %v744 = vadd.f32 %v733, %v743
  %v745 = vadd.f32 %v738, %v743
  %vm746 = vcmp.gt.f32.partialorder %v744, 0.0
  %vm747 = vcmp.gt.f32.partialorder %v745, 0.0
  %v748 = vmul.f32 %v744, 0.2
  %v749 = vmul.f32 %v745, 0.2
  %v750 = vsel %vm746, %v744, %v748
  %v751 = vsel %vm747, %v745, %v749
  %v752 = vadd.f32 %v750, %v31
  %v753 = vadd.f32 %v751, %v32
  %v754 = vsel %vm155, %v752, -inf
  %755 = vmax.xlane.f32.xlu0 %v754
  %v756 = vpop.xlane.xlu0 %755
  %v757 = vsel %vm155, %v753, -inf
  %758 = vmax.xlane.f32.xlu0 %v757
  %v759 = vpop.xlane.xlu0 %758
  %v760 = vsub.f32 %v752, %v756
  %v761 = vsub.f32 %v753, %v759
  %v762 = vmul.f32 %v760, 1.442695
  %v763 = vpow.pop %v762
  %v764 = vmul.f32 %v761, 1.442695
  %v765 = vpow.pop %v764
  %v766 = vsel %vm155, %v763, 0.0
  %767 = vadd.xlane.f32.xlu0 %v766
  %v768 = vpop.xlane.xlu0 %767
  %v769 = vsel %vm155, %v765, 0.0
  %770 = vadd.xlane.f32.xlu0 %v769
  %v771 = vpop.xlane.xlu0 %770
  %v772 = vrcp.pop %v768
  %v773 = vrcp.pop %v771
  %v774 = vmul.f32 %v763, %v772
  %v775 = vmul.f32 %v765, %v773
  %v776 = vpack.c.bf16 %v775, %v774
  %v777 = vpack.c.bf16 %v680, %v677
  %778 = vrot.lane.b32.xlu0 %v183, 80
  %v779 = vpop.permute.xlu0 %778
  %v782 = vsel %vm155, %v776, 0
  %784 = vmatprep.subr.bf16.mxu0 0
  %785 = vmatpush1.bf16.msra.mxu0 %v777
  %786 = vmatprep.subr.bf16.mxu0 0
  %787 = vmatpush1.bf16.msra.mxu0 0
  %788 = vmatprep.subr.bf16.mxu0 0
  %789 = vmatpush1.bf16.msra.mxu0 0
  %790 = vmatprep.subr.bf16.mxu0 0
  %791 = vmatpush1.bf16.msra.mxu0 0
  %792 = vmatprep.subr.bf16.mxu0 0
  %793 = vmatpush1.bf16.msra.mxu0 0
  %794 = vmatprep.subr.bf16.mxu0 0
  %795 = vmatpush1.bf16.msra.mxu0 0
  %796 = vmatprep.subr.bf16.mxu0 0
  %797 = vmatpush1.bf16.msra.mxu0 0
  %798 = vmatprep.subr.bf16.mxu0 0
  %799 = vmatpush1.bf16.msra.mxu0 0
  %800 = vmatprep.subr.bf16.mxu0 0
  %801 = vmatpush1.bf16.msra.mxu0 0
  %802 = vmatprep.subr.bf16.mxu0 0
  %803 = vmatpush1.bf16.msra.mxu0 0
  %804 = vmatprep.subr.bf16.mxu0 0
  %805 = vmatpush1.bf16.msra.mxu0 0
  %806 = vmatprep.subr.bf16.mxu0 0
  %807 = vmatpush1.bf16.msra.mxu0 0
  %808 = vmatprep.subr.bf16.mxu0 0
  %809 = vmatpush1.bf16.msra.mxu0 0
  %810 = vmatprep.subr.bf16.mxu0 0
  %811 = vmatpush1.bf16.msra.mxu0 0
  %812 = vmatprep.subr.bf16.mxu0 0
  %813 = vmatpush1.bf16.msra.mxu0 0
  %814 = vmatprep.subr.bf16.mxu0 0
  %815 = vmatpush1.bf16.msra.mxu0 0
  %816 = vmatprep.mubr.bf16.mxu0 0
  %817 = vmatmul.mubr.bf16.gmra.mrb[0].mxu0 %v782
  %v818 = vpop.f32.mrb[0].mxu0
  %v819 = vadd.f32 %v779, %v818
  %v820 = vpop.f32.mrb[0].mxu0
  %v821 = vpop.f32.mrb[0].mxu0
  %v822 = vadd.f32 %v779, %v821
  %v823 = vpop.f32.mrb[0].mxu0
  %824 = vdwg.mxu0
  %v825 = vmax.f32 %v819, 0.0
  %v826 = vmax.f32 %v822, 0.0
  %vm827 = vcmask 7168
  %828 = vst.msk [vmem:[%s4] sm:$0xff] %vm827, %v825
  %829 = vst.msk [vmem:[%s4 + $0x8] sm:$0xff] %vm827, %v826
  %v830 = vld [vmem:[%s2] sm:$0x3]
  %v831 = vpack.c.bf16 %v830, %v830
  %v833 = vsel %vm155, %v831, 0
  %835 = vmatprep.subr.bf16.mxu0 0
  %836 = vmatpush1.bf16.msra.mxu0 %v629
  %837 = vmatprep.subr.bf16.mxu0 0
  %838 = vmatpush1.bf16.msra.mxu0 0
  %839 = vmatprep.subr.bf16.mxu0 0
  %840 = vmatpush1.bf16.msra.mxu0 0
  %841 = vmatprep.subr.bf16.mxu0 0
  %842 = vmatpush1.bf16.msra.mxu0 0
  %843 = vmatprep.subr.bf16.mxu0 0
  %844 = vmatpush1.bf16.msra.mxu0 0
  %845 = vmatprep.subr.bf16.mxu0 0
  %846 = vmatpush1.bf16.msra.mxu0 0
  %847 = vmatprep.subr.bf16.mxu0 0
  %848 = vmatpush1.bf16.msra.mxu0 0
  %849 = vmatprep.subr.bf16.mxu0 0
  %850 = vmatpush1.bf16.msra.mxu0 0
  %851 = vmatprep.subr.bf16.mxu0 0
  %852 = vmatpush1.bf16.msra.mxu0 0
  %853 = vmatprep.subr.bf16.mxu0 0
  %854 = vmatpush1.bf16.msra.mxu0 0
  %855 = vmatprep.subr.bf16.mxu0 0
  %856 = vmatpush1.bf16.msra.mxu0 0
  %857 = vmatprep.subr.bf16.mxu0 0
  %858 = vmatpush1.bf16.msra.mxu0 0
  %859 = vmatprep.subr.bf16.mxu0 0
  %860 = vmatpush1.bf16.msra.mxu0 0
  %861 = vmatprep.subr.bf16.mxu0 0
  %862 = vmatpush1.bf16.msra.mxu0 0
  %863 = vmatprep.subr.bf16.mxu0 0
  %864 = vmatpush1.bf16.msra.mxu0 0
  %865 = vmatprep.subr.bf16.mxu0 0
  %866 = vmatpush1.bf16.msra.mxu0 0
  %867 = vmatprep.mubr.bf16.mxu0 0
  %868 = vmatmul.mubr.bf16.gmra.mrb[0].mxu0 %v833
  %v869 = vpop.f32.mrb[0].mxu0
  %v870 = vadd.f32 0.0, %v869
  %v871 = vpop.f32.mrb[0].mxu0
  %v872 = vpop.f32.mrb[0].mxu0
  %v873 = vpop.f32.mrb[0].mxu0
  %874 = vdwg.mxu0
  %v875 = vpack.c.bf16 %v870, %v870
  %v876 = vld [vmem:[%s3 + $0x8] sm:$0xff]
  %v877 = vld [vmem:[%s3 + $0x10] sm:$0xff]
  %v878 = vpack.c.bf16 %v877, %v876
  %v879 = vld [vmem:[%s3 + $0x1b] sm:$0x1]
  %v880 = vlaneseq
  %v881 = vshrl.u32 %v880, 7
  %v882 = vsub.s32 0, %v881
  %v883 = vrot.slane %v879, %v882
  %885 = vrot.lane.b32.xlu0 %v878, 88
  %v886 = vpop.permute.xlu0 %885
  %889 = vrot.lane.b32.xlu0 %v883, 64
  %v890 = vpop.permute.xlu0 %889
  %v893 = vsel %vm155, %v875, 0
  %895 = vmatprep.subr.bf16.mxu0 0
  %896 = vmatpush1.bf16.msra.mxu0 %v886
  %897 = vmatprep.subr.bf16.mxu0 0
  %898 = vmatpush1.bf16.msra.mxu0 0
  %899 = vmatprep.subr.bf16.mxu0 0
  %900 = vmatpush1.bf16.msra.mxu0 0
  %901 = vmatprep.subr.bf16.mxu0 0
  %902 = vmatpush1.bf16.msra.mxu0 0
  %903 = vmatprep.subr.bf16.mxu0 0
  %904 = vmatpush1.bf16.msra.mxu0 0
  %905 = vmatprep.subr.bf16.mxu0 0
  %906 = vmatpush1.bf16.msra.mxu0 0
  %907 = vmatprep.subr.bf16.mxu0 0
  %908 = vmatpush1.bf16.msra.mxu0 0
  %909 = vmatprep.subr.bf16.mxu0 0
  %910 = vmatpush1.bf16.msra.mxu0 0
  %911 = vmatprep.subr.bf16.mxu0 0
  %912 = vmatpush1.bf16.msra.mxu0 0
  %913 = vmatprep.subr.bf16.mxu0 0
  %914 = vmatpush1.bf16.msra.mxu0 0
  %915 = vmatprep.subr.bf16.mxu0 0
  %916 = vmatpush1.bf16.msra.mxu0 0
  %917 = vmatprep.subr.bf16.mxu0 0
  %918 = vmatpush1.bf16.msra.mxu0 0
  %919 = vmatprep.subr.bf16.mxu0 0
  %920 = vmatpush1.bf16.msra.mxu0 0
  %921 = vmatprep.subr.bf16.mxu0 0
  %922 = vmatpush1.bf16.msra.mxu0 0
  %923 = vmatprep.subr.bf16.mxu0 0
  %924 = vmatpush1.bf16.msra.mxu0 0
  %925 = vmatprep.subr.bf16.mxu0 0
  %926 = vmatpush1.bf16.msra.mxu0 0
  %927 = vmatprep.mubr.bf16.mxu0 0
  %928 = vmatmul.mubr.bf16.gmra.mrb[0].mxu0 %v893
  %v929 = vpop.f32.mrb[0].mxu0
  %v930 = vadd.f32 %v890, %v929
  %v931 = vpop.f32.mrb[0].mxu0
  %v932 = vpop.f32.mrb[0].mxu0
  %v933 = vpop.f32.mrb[0].mxu0
  %934 = vdwg.mxu0
  %v935 = vmax.f32 %v930, 0.0
  %v936 = vpack.c.bf16 %v935, %v935
  %937 = vrot.lane.b32.xlu0 %v878, 72
  %v938 = vpop.permute.xlu0 %937
  %940 = vrot.lane.b32.xlu0 %v883, 48
  %v941 = vpop.permute.xlu0 %940
  %v944 = vsel %vm155, %v936, 0
  %946 = vmatprep.subr.bf16.mxu0 0
  %947 = vmatpush1.bf16.msra.mxu0 %v938
  %948 = vmatprep.subr.bf16.mxu0 0
  %949 = vmatpush1.bf16.msra.mxu0 0
  %950 = vmatprep.subr.bf16.mxu0 0
  %951 = vmatpush1.bf16.msra.mxu0 0
  %952 = vmatprep.subr.bf16.mxu0 0
  %953 = vmatpush1.bf16.msra.mxu0 0
  %954 = vmatprep.subr.bf16.mxu0 0
  %955 = vmatpush1.bf16.msra.mxu0 0
  %956 = vmatprep.subr.bf16.mxu0 0
  %957 = vmatpush1.bf16.msra.mxu0 0
  %958 = vmatprep.subr.bf16.mxu0 0
  %959 = vmatpush1.bf16.msra.mxu0 0
  %960 = vmatprep.subr.bf16.mxu0 0
  %961 = vmatpush1.bf16.msra.mxu0 0
  %962 = vmatprep.subr.bf16.mxu0 0
  %963 = vmatpush1.bf16.msra.mxu0 0
  %964 = vmatprep.subr.bf16.mxu0 0
  %965 = vmatpush1.bf16.msra.mxu0 0
  %966 = vmatprep.subr.bf16.mxu0 0
  %967 = vmatpush1.bf16.msra.mxu0 0
  %968 = vmatprep.subr.bf16.mxu0 0
  %969 = vmatpush1.bf16.msra.mxu0 0
  %970 = vmatprep.subr.bf16.mxu0 0
  %971 = vmatpush1.bf16.msra.mxu0 0
  %972 = vmatprep.subr.bf16.mxu0 0
  %973 = vmatpush1.bf16.msra.mxu0 0
  %974 = vmatprep.subr.bf16.mxu0 0
  %975 = vmatpush1.bf16.msra.mxu0 0
  %976 = vmatprep.subr.bf16.mxu0 0
  %977 = vmatpush1.bf16.msra.mxu0 0
  %978 = vmatprep.mubr.bf16.mxu0 0
  %979 = vmatmul.mubr.bf16.gmra.mrb[0].mxu0 %v944
  %v980 = vpop.f32.mrb[0].mxu0
  %v981 = vadd.f32 %v941, %v980
  %v982 = vpop.f32.mrb[0].mxu0
  %v983 = vpop.f32.mrb[0].mxu0
  %v984 = vpop.f32.mrb[0].mxu0
  %985 = vdwg.mxu0
  %vm986 = vcmask 1024
  %987 = vst.msk [vmem:[%s5] sm:$0x3] %vm986, %v981
  // Predicated region
  $region18: #{gcn31_forward.1} parent=0 // pred_check
    _
  $region19: #{gcn31_forward.1} parent=0 // pred_check_branch
    %989 = sbr.rel (0) target = $region21
  $region20: #{gcn31_forward.1} parent=0 // pred_region
    _
  $region21: #{gcn31_forward.1} parent=0 // pred_fallthru
    _
  // Predicated region
  $region22: #{gcn31_forward.1} parent=0 // pred_check
    _
  $region23: #{gcn31_forward.1} parent=0 // pred_check_branch
    %991 = sbr.rel (0) target = $region25
  $region24: #{gcn31_forward.1} parent=0 // pred_region
    _
  $region25: #{gcn31_forward.1} parent=0 // pred_fallthru
    _
  // Predicated region
  $region26: #{gcn31_forward.1} parent=0 // pred_check
    _
  $region27: #{gcn31_forward.1} parent=0 // pred_check_branch
    %993 = sbr.rel (0) target = $region29
  $region28: #{gcn31_forward.1} parent=0 // pred_region
    _
  $region29: #{gcn31_forward.1} parent=0 // pred_fallthru
    _
  // Predicated region
  $region30: #{gcn31_forward.1} parent=0 // pred_check
    _
  $region31: #{gcn31_forward.1} parent=0 // pred_check_branch
    %995 = sbr.rel (0) target = $region33
  $region32: #{gcn31_forward.1} parent=0 // pred_region
    _
  $region33: #{gcn31_forward.1} parent=0 // pred_fallthru
    _

</llo_original>
